<compile_context>
chip_gen: v7x
topology: tpu7x:2x2x1
jax: 0.10.0
libtpu: 0.0.40
codegen_flags: <defaults>
</compile_context>

<pallas_src>
import functools
import numpy as np

import jax
import jax.numpy as jnp
from jax.experimental import pallas as pl
from jax.experimental.pallas import tpu as pltpu


# ----------------------------------------------------------------------------
# Config (small, deterministic, consistent with the module's forward)
# ----------------------------------------------------------------------------
NUM_STAGES = 3
N, C, H, W = 2, 4, 16, 16          # input: NCHW
NUM_CLASSES1 = 3                   # net1 head output channels
NUM_CLASSES2 = 3                   # net2 head output channels
# Combined head is padded to a full 8-row sublane tile for unmasked stores.
HEAD_ROWS = max(8, ((NUM_CLASSES1 + NUM_CLASSES2 + 7) // 8) * 8)

# Connectivity: stage i may read the *other* net's features from stages j<=i.
NET1_CONN = np.tril(np.ones((NUM_STAGES, NUM_STAGES), dtype=np.int32))
NET2_CONN = np.tril(np.ones((NUM_STAGES, NUM_STAGES), dtype=np.int32))
NET1_IN_DEG = NET1_CONN.sum(axis=1)   # [1, 2, 3]
NET2_IN_DEG = NET2_CONN.sum(axis=1)


# ----------------------------------------------------------------------------
# Deterministic parameter construction (shapes follow EvoNet.__init__).
# Weights stored in the PyTorch-equivalent "x @ W + b" (Cin, Cout) form.
# ----------------------------------------------------------------------------
def make_params(key):
    params = {}

    def init_linear(k, cin, cout, name):
        kw, kb = jax.random.split(k)
        params[f"{name}_w"] = jax.random.normal(kw, (cin, cout), jnp.float32) * 0.1
        params[f"{name}_b"] = jax.random.normal(kb, (cout,), jnp.float32) * 0.01

    keys = jax.random.split(key, 4 * NUM_STAGES + 2 + 1)
    k = 0
    for s in range(NUM_STAGES):
        # net1 / net2 backbone stage: 1x1 conv C -> C (+ReLU)
        init_linear(keys[k], C, C, f"net1_stage{s}"); k += 1
        init_linear(keys[k], C, C, f"net2_stage{s}"); k += 1
        # NDDR fusion op: 1x1 conv (in_degree + 1) * C -> C (+ReLU)
        init_linear(keys[k], (int(NET1_IN_DEG[s]) + 1) * C, C, f"net1_fuse{s}"); k += 1
        init_linear(keys[k], (int(NET2_IN_DEG[s]) + 1) * C, C, f"net2_fuse{s}"); k += 1
    # task heads: 1x1 conv C -> num_classes (no ReLU)
    init_linear(keys[k], C, NUM_CLASSES1, "net1_head"); k += 1
    init_linear(keys[k], C, NUM_CLASSES2, "net2_head"); k += 1

    # Alphas: declared in __init__ but unused in forward (supernet baseline).
    params["net1_alphas"] = jnp.zeros(NET1_CONN.shape, jnp.float32)
    params["net2_alphas"] = jnp.zeros(NET2_CONN.shape, jnp.float32)
    return params


# ----------------------------------------------------------------------------
# One-time weight re-layout for the fused kernel.
#
# Kernel feature layout is transposed: features are (channels, pixels), so a
# 1x1 conv is W^T @ X.  The history slab row layout is:
#   rows 0:C            current x          rows C:2C              current y
#   rows 2C(j+1) .. +C  xs[j]              rows 2C(j+1)+C .. +C   ys[j]
# Per stage we build (weights in bf16 for single-pass MXU, biases in f32):
#   stage{s}_w : (2C, 2C)          block-diag(W1s^T, W2s^T)           (net1|net2)
#   fuse{s}_w  : (2C, 2C*(s+2))    net1 fuse rows read [x, ys[j]...],
#                                  net2 fuse rows read [y, xs[j]...]
#   head_w     : (HEAD_ROWS, 2C)   rows 0:C1 = Wh1^T, rows C1:C1+C2 = Wh2^T,
#                                  remaining rows zero (8-row padded store)
# Zero-filled columns/rows contribute exactly 0, so the math equals the
# original per-net convolutions.
# ----------------------------------------------------------------------------
def pack_params(params):
    c = C
    two_c = 2 * c
    wdt = jnp.bfloat16               # MXU operand dtype for packed weights
    packed = {}
    for s in range(NUM_STAGES):
        # combined backbone stage conv
        ws = jnp.zeros((two_c, two_c), jnp.float32)
        ws = ws.at[0:c, 0:c].set(params[f"net1_stage{s}_w"].T)
        ws = ws.at[c:two_c, c:two_c].set(params[f"net2_stage{s}_w"].T)
        bs = jnp.concatenate([params[f"net1_stage{s}_b"],
                              params[f"net2_stage{s}_b"]]).reshape(two_c, 1)
        packed[f"stage{s}_w"], packed[f"stage{s}_b"] = ws.astype(wdt), bs

        # combined NDDR fusion conv
        kin = two_c * (s + 2)
        w1ft = params[f"net1_fuse{s}_w"].T      # (C, (deg1+1)*C)
        w2ft = params[f"net2_fuse{s}_w"].T      # (C, (deg2+1)*C)
        wf = jnp.zeros((two_c, kin), jnp.float32)
        wf = wf.at[0:c, 0:c].set(w1ft[:, 0:c])               # net1: own x first
        wf = wf.at[c:two_c, c:two_c].set(w2ft[:, 0:c])       # net2: own y first
        for k, j in enumerate(np.nonzero(NET1_CONN[s])[0]):  # net1 reads ys[j]
            j = int(j)
            assert j <= s, "connectivity can only reference already-run stages"
            col = two_c * (j + 1) + c
            wf = wf.at[0:c, col:col + c].set(w1ft[:, (k + 1) * c:(k + 2) * c])
        for k, j in enumerate(np.nonzero(NET2_CONN[s])[0]):  # net2 reads xs[j]
            j = int(j)
            assert j <= s, "connectivity can only reference already-run stages"
            col = two_c * (j + 1)
            wf = wf.at[c:two_c, col:col + c].set(w2ft[:, (k + 1) * c:(k + 2) * c])
        bf = jnp.concatenate([params[f"net1_fuse{s}_b"],
                              params[f"net2_fuse{s}_b"]]).reshape(two_c, 1)
        packed[f"fuse{s}_w"], packed[f"fuse{s}_b"] = wf.astype(wdt), bf

    # combined heads, zero-padded to HEAD_ROWS rows for full-tile stores
    wh = jnp.zeros((HEAD_ROWS, two_c), jnp.float32)
    wh = wh.at[0:NUM_CLASSES1, 0:c].set(params["net1_head_w"].T)
    wh = wh.at[NUM_CLASSES1:NUM_CLASSES1 + NUM_CLASSES2, c:two_c].set(
        params["net2_head_w"].T)
    bh = jnp.zeros((HEAD_ROWS, 1), jnp.float32)
    bh = bh.at[0:NUM_CLASSES1, 0].set(params["net1_head_b"])
    bh = bh.at[NUM_CLASSES1:NUM_CLASSES1 + NUM_CLASSES2, 0].set(
        params["net2_head_b"])
    packed["head_w"], packed["head_b"] = wh.astype(wdt), bh
    return packed


# ----------------------------------------------------------------------------
# The single fused Pallas kernel: whole EvoNet forward, VMEM-resident.
# ----------------------------------------------------------------------------
def _evonet_fused_kernel(*refs, num_stages, n, c, hw):
    two_c = 2 * c
    x_ref = refs[0]
    p = 1
    stage_refs = []
    for _ in range(num_stages):
        stage_refs.append(refs[p:p + 4])      # (ws, bs, wf, bf)
        p += 4
    wh_ref, bh_ref = refs[p], refs[p + 1]
    out_ref = refs[p + 2]                     # (n, HEAD_ROWS, hw) packed output
    hist = refs[p + 3]                        # VMEM scratch (2C*(S+1), n*hw) f32

    # Prologue: write each batch slice straight into the slab (no concatenate;
    # lane offsets i*hw are multiples of 128 -> unmasked stores).
    # y starts as x.clone().
    for i in range(n):
        xi = x_ref[i]                                         # (c, hw)
        hist[0:c, i * hw:(i + 1) * hw] = xi                   # current x
        hist[c:two_c, i * hw:(i + 1) * hw] = xi               # current y

    for s in range(num_stages):
        ws_ref, bs_ref, wf_ref, bf_ref = stage_refs[s]

        # Both nets' backbone stage convs as one matmul (+bias, +ReLU).
        # bf16 x bf16 operands, f32 accumulate.
        st = jnp.dot(ws_ref[...], hist[0:two_c, :].astype(jnp.bfloat16),
                     preferred_element_type=jnp.float32) + bs_ref[...]
        st = jnp.maximum(st, 0.0)
        hist[0:two_c, :] = st                                 # current [x; y]
        hist[two_c * (s + 1):two_c * (s + 2), :] = st         # [xs[s]; ys[s]]

        # Both NDDR fusion convs as one matmul over a contiguous slab slice.
        # NOTE: correctness relies on lower-triangular connectivity: every row
        # of hist[0:kin] has been written before this read (asserted at pack
        # time); a forward-referencing connectivity would read stale VMEM.
        kin = two_c * (s + 2)
        fu = jnp.dot(wf_ref[...], hist[0:kin, :].astype(jnp.bfloat16),
                     preferred_element_type=jnp.float32) + bf_ref[...]
        fu = jnp.maximum(fu, 0.0)
        hist[0:two_c, :] = fu                                 # fused [x; y]

    # Both heads as one matmul into an 8-row padded output; per-batch slices
    # land at lane multiples of hw=256 -> full-tile unmasked stores.
    out = jnp.dot(wh_ref[...], hist[0:two_c, :].astype(jnp.bfloat16),
                  preferred_element_type=jnp.float32) + bh_ref[...]
    for i in range(n):
        out_ref[i, :, :] = out[:, i * hw:(i + 1) * hw]


# ----------------------------------------------------------------------------
# EvoNet.forward wrapper (one pallas_call, reshape/slice-only boundaries)
# ----------------------------------------------------------------------------
def evonet_forward(packed, x_nchw):
    n, c, h, w = x_nchw.shape
    hw = h * w
    two_c = 2 * c
    x_flat = x_nchw.reshape(n, c, hw)         # free reshape, no transpose

    args = [x_flat]
    for s in range(NUM_STAGES):
        args += [packed[f"stage{s}_w"], packed[f"stage{s}_b"],
                 packed[f"fuse{s}_w"], packed[f"fuse{s}_b"]]
    args += [packed["head_w"], packed["head_b"]]

    kernel = functools.partial(
        _evonet_fused_kernel,
        num_stages=NUM_STAGES, n=n, c=c, hw=hw)

    # Advisory cost: ~0.85 MFLOP, bytes = input + packed weights + output.
    flops = 0
    for s in range(NUM_STAGES):
        flops += 2 * two_c * two_c * n * hw                   # stage matmul
        flops += 2 * two_c * (two_c * (s + 2)) * n * hw       # fusion matmul
    flops += 2 * HEAD_ROWS * two_c * n * hw                   # head matmul
    bytes_accessed = sum(int(a.size) * a.dtype.itemsize for a in args)
    bytes_accessed += n * HEAD_ROWS * hw * 4                  # packed output

    out = pl.pallas_call(
        kernel,
        out_shape=jax.ShapeDtypeStruct((n, HEAD_ROWS, hw), jnp.float32),
        # No grid: everything fits in VMEM as a single whole-array block.
        # (When scaling up: add a "parallel" pixel-axis grid for v7x's 2 TCs,
        #  constant index_maps for weights, and set vmem_limit_bytes.)
        scratch_shapes=[pltpu.VMEM((2 * c * (NUM_STAGES + 1), n * hw),
                                   jnp.float32)],
        cost_estimate=pl.CostEstimate(flops=int(flops), transcendentals=0,
                                      bytes_accessed=int(bytes_accessed)),
    )(*args)

    # Host-side slice of the 8-row padded head output (trivial XLA slice).
    out1 = out[:, 0:NUM_CLASSES1, :].reshape(n, NUM_CLASSES1, h, w)
    out2 = out[:, NUM_CLASSES1:NUM_CLASSES1 + NUM_CLASSES2, :].reshape(
        n, NUM_CLASSES2, h, w)
    return {"out1": out1, "out2": out2}


# ----------------------------------------------------------------------------
# Pure-JAX reference (mirrors the PyTorch forward exactly, f32/HIGHEST).
# ----------------------------------------------------------------------------
def evonet_reference(params, x_nchw):
    n, c, h, w = x_nchw.shape
    p = n * h * w
    hi = jax.lax.Precision.HIGHEST
    x = jnp.transpose(x_nchw, (0, 2, 3, 1)).reshape(p, c)
    y = x
    xs, ys = [], []
    for s in range(NUM_STAGES):
        x = jnp.maximum(jnp.dot(x, params[f"net1_stage{s}_w"], precision=hi)
                        + params[f"net1_stage{s}_b"], 0.0)
        y = jnp.maximum(jnp.dot(y, params[f"net2_stage{s}_w"], precision=hi)
                        + params[f"net2_stage{s}_b"], 0.0)
        xs.append(x); ys.append(y)
        f1 = jnp.concatenate(
            [x] + [ys[int(j)] for j in np.nonzero(NET1_CONN[s])[0]], axis=1)
        f2 = jnp.concatenate(
            [y] + [xs[int(j)] for j in np.nonzero(NET2_CONN[s])[0]], axis=1)
        x = jnp.maximum(jnp.dot(f1, params[f"net1_fuse{s}_w"], precision=hi)
                        + params[f"net1_fuse{s}_b"], 0.0)
        y = jnp.maximum(jnp.dot(f2, params[f"net2_fuse{s}_w"], precision=hi)
                        + params[f"net2_fuse{s}_b"], 0.0)
    o1 = jnp.dot(x, params["net1_head_w"], precision=hi) + params["net1_head_b"]
    o2 = jnp.dot(y, params["net2_head_w"], precision=hi) + params["net2_head_b"]

    def back(a, co):
        return jnp.transpose(a.reshape(n, h, w, co), (0, 3, 1, 2))
    return {"out1": back(o1, NUM_CLASSES1), "out2": back(o2, NUM_CLASSES2)}


if __name__ == "__main__":
    key = jax.random.PRNGKey(0)
    k_params, k_x = jax.random.split(key)
    params = make_params(k_params)
    x = jax.random.normal(k_x, (N, C, H, W), jnp.float32)   # NCHW input

    packed = pack_params(params)   # one-time weight re-layout for the kernel
    fwd = jax.jit(evonet_forward)
    result = fwd(packed, x)
    jax.block_until_ready(result)

    assert result["out1"].shape == (N, NUM_CLASSES1, H, W)
    assert result["out2"].shape == (N, NUM_CLASSES2, H, W)

    # Kernel uses bf16 MXU operands (f32 accumulate) vs an f32/HIGHEST
    # reference, so tolerances are loosened accordingly; a structurally wrong
    # kernel would still be orders of magnitude outside these bounds.
    ref = evonet_reference(params, x)
    np.testing.assert_allclose(np.asarray(result["out1"]),
                               np.asarray(ref["out1"]), rtol=5e-2, atol=1e-2)
    np.testing.assert_allclose(np.asarray(result["out2"]),
                               np.asarray(ref["out2"]), rtol=5e-2, atol=1e-2)
    print("KERNEL_OK")
</pallas_src>

<mosaic_0001>
module attributes {stable_mosaic.version = 11 : i64} {
  func.func @_evonet_fused_kernel(%arg0: memref<2x4x256xf32, #tpu.memory_space<vmem>>, %arg1: memref<8x8xbf16, #tpu.memory_space<vmem>>, %arg2: memref<8x1xf32, #tpu.memory_space<vmem>>, %arg3: memref<8x16xbf16, #tpu.memory_space<vmem>>, %arg4: memref<8x1xf32, #tpu.memory_space<vmem>>, %arg5: memref<8x8xbf16, #tpu.memory_space<vmem>>, %arg6: memref<8x1xf32, #tpu.memory_space<vmem>>, %arg7: memref<8x24xbf16, #tpu.memory_space<vmem>>, %arg8: memref<8x1xf32, #tpu.memory_space<vmem>>, %arg9: memref<8x8xbf16, #tpu.memory_space<vmem>>, %arg10: memref<8x1xf32, #tpu.memory_space<vmem>>, %arg11: memref<8x32xbf16, #tpu.memory_space<vmem>>, %arg12: memref<8x1xf32, #tpu.memory_space<vmem>>, %arg13: memref<8x8xbf16, #tpu.memory_space<vmem>>, %arg14: memref<8x1xf32, #tpu.memory_space<vmem>>, %arg15: memref<2x8x256xf32, #tpu.memory_space<vmem>>, %arg16: memref<32x512xf32, #tpu.memory_space<vmem>>) attributes {dimension_semantics = [], scalar_prefetch = 0 : i64, scratch_operands = 1 : i64, tpu.core_type = #tpu.core_type<tc>} {
    %c0 = arith.constant 0 : index
    %c0_0 = arith.constant 0 : index
    %c0_1 = arith.constant 0 : index
    %0 = vector.load %arg0[%c0, %c0_0, %c0_1] : memref<2x4x256xf32, #tpu.memory_space<vmem>>, vector<1x4x256xf32>
    %1 = vector.shape_cast %0 : vector<1x4x256xf32> to vector<4x256xf32>
    %c0_2 = arith.constant 0 : index
    %c0_3 = arith.constant 0 : index
    %2 = vector.load %arg16[%c0_2, %c0_3] : memref<32x512xf32, #tpu.memory_space<vmem>>, vector<4x256xf32>
    tpu.vector_store %arg16[%c0_2, %c0_3], %1 {strides = array<i32>} : memref<32x512xf32, #tpu.memory_space<vmem>>, vector<4x256xf32>,
    %c4 = arith.constant 4 : index
    %c0_4 = arith.constant 0 : index
    %3 = vector.load %arg16[%c4, %c0_4] : memref<32x512xf32, #tpu.memory_space<vmem>>, vector<4x256xf32>
    tpu.vector_store %arg16[%c4, %c0_4], %1 {strides = array<i32>} : memref<32x512xf32, #tpu.memory_space<vmem>>, vector<4x256xf32>,
    %c1 = arith.constant 1 : index
    %c0_5 = arith.constant 0 : index
    %c0_6 = arith.constant 0 : index
    %4 = vector.load %arg0[%c1, %c0_5, %c0_6] : memref<2x4x256xf32, #tpu.memory_space<vmem>>, vector<1x4x256xf32>
    %5 = vector.shape_cast %4 : vector<1x4x256xf32> to vector<4x256xf32>
    %c0_7 = arith.constant 0 : index
    %c256 = arith.constant 256 : index
    %6 = vector.load %arg16[%c0_7, %c256] : memref<32x512xf32, #tpu.memory_space<vmem>>, vector<4x256xf32>
    tpu.vector_store %arg16[%c0_7, %c256], %5 {strides = array<i32>} : memref<32x512xf32, #tpu.memory_space<vmem>>, vector<4x256xf32>,
    %c4_8 = arith.constant 4 : index
    %c256_9 = arith.constant 256 : index
    %7 = vector.load %arg16[%c4_8, %c256_9] : memref<32x512xf32, #tpu.memory_space<vmem>>, vector<4x256xf32>
    tpu.vector_store %arg16[%c4_8, %c256_9], %5 {strides = array<i32>} : memref<32x512xf32, #tpu.memory_space<vmem>>, vector<4x256xf32>,
    %c0_10 = arith.constant 0 : index
    %c0_11 = arith.constant 0 : index
    %8 = vector.load %arg1[%c0_10, %c0_11] : memref<8x8xbf16, #tpu.memory_space<vmem>>, vector<8x8xbf16>
    %c0_12 = arith.constant 0 : index
    %c0_13 = arith.constant 0 : index
    %9 = vector.load %arg16[%c0_12, %c0_13] : memref<32x512xf32, #tpu.memory_space<vmem>>, vector<8x512xf32>
    %10 = arith.truncf %9 : vector<8x512xf32> to vector<8x512xbf16>
    %cst = arith.constant dense<0.000000e+00> : vector<8x512xf32>
    %11 = tpu.matmul %8, %10, %cst {dimension_numbers = #tpu.dot_dimension_numbers<[1], [0], [0], [1], [0, 0, 1, 1], [], []>} : vector<8x8xbf16>, vector<8x512xbf16>, vector<8x512xf32> -> vector<8x512xf32>
    %c0_14 = arith.constant 0 : index
    %c0_15 = arith.constant 0 : index
    %12 = vector.load %arg2[%c0_14, %c0_15] : memref<8x1xf32, #tpu.memory_space<vmem>>, vector<8x1xf32>
    %13 = vector.broadcast %12 : vector<8x1xf32> to vector<8x512xf32>
    %14 = arith.addf %11, %13 : vector<8x512xf32>
    %cst_16 = arith.constant 0.000000e+00 : f32
    %15 = vector.broadcast %cst_16 : f32 to vector<8x512xf32>
    %16 = arith.maximumf %14, %15 : vector<8x512xf32>
    %c0_17 = arith.constant 0 : index
    %c0_18 = arith.constant 0 : index
    %17 = vector.load %arg16[%c0_17, %c0_18] : memref<32x512xf32, #tpu.memory_space<vmem>>, vector<8x512xf32>
    tpu.vector_store %arg16[%c0_17, %c0_18], %16 {strides = array<i32>} : memref<32x512xf32, #tpu.memory_space<vmem>>, vector<8x512xf32>,
    %c8 = arith.constant 8 : index
    %c0_19 = arith.constant 0 : index
    %18 = vector.load %arg16[%c8, %c0_19] : memref<32x512xf32, #tpu.memory_space<vmem>>, vector<8x512xf32>
    tpu.vector_store %arg16[%c8, %c0_19], %16 {strides = array<i32>} : memref<32x512xf32, #tpu.memory_space<vmem>>, vector<8x512xf32>,
    %c0_20 = arith.constant 0 : index
    %c0_21 = arith.constant 0 : index
    %19 = vector.load %arg3[%c0_20, %c0_21] : memref<8x16xbf16, #tpu.memory_space<vmem>>, vector<8x16xbf16>
    %c0_22 = arith.constant 0 : index
    %c0_23 = arith.constant 0 : index
    %20 = vector.load %arg16[%c0_22, %c0_23] : memref<32x512xf32, #tpu.memory_space<vmem>>, vector<16x512xf32>
    %21 = arith.truncf %20 : vector<16x512xf32> to vector<16x512xbf16>
    %cst_24 = arith.constant dense<0.000000e+00> : vector<8x512xf32>
    %22 = tpu.matmul %19, %21, %cst_24 {dimension_numbers = #tpu.dot_dimension_numbers<[1], [0], [0], [1], [0, 0, 1, 1], [], []>} : vector<8x16xbf16>, vector<16x512xbf16>, vector<8x512xf32> -> vector<8x512xf32>
    %c0_25 = arith.constant 0 : index
    %c0_26 = arith.constant 0 : index
    %23 = vector.load %arg4[%c0_25, %c0_26] : memref<8x1xf32, #tpu.memory_space<vmem>>, vector<8x1xf32>
    %24 = vector.broadcast %23 : vector<8x1xf32> to vector<8x512xf32>
    %25 = arith.addf %22, %24 : vector<8x512xf32>
    %cst_27 = arith.constant 0.000000e+00 : f32
    %26 = vector.broadcast %cst_27 : f32 to vector<8x512xf32>
    %27 = arith.maximumf %25, %26 : vector<8x512xf32>
    %c0_28 = arith.constant 0 : index
    %c0_29 = arith.constant 0 : index
    %28 = vector.load %arg16[%c0_28, %c0_29] : memref<32x512xf32, #tpu.memory_space<vmem>>, vector<8x512xf32>
    tpu.vector_store %arg16[%c0_28, %c0_29], %27 {strides = array<i32>} : memref<32x512xf32, #tpu.memory_space<vmem>>, vector<8x512xf32>,
    %c0_30 = arith.constant 0 : index
    %c0_31 = arith.constant 0 : index
    %29 = vector.load %arg5[%c0_30, %c0_31] : memref<8x8xbf16, #tpu.memory_space<vmem>>, vector<8x8xbf16>
    %c0_32 = arith.constant 0 : index
    %c0_33 = arith.constant 0 : index
    %30 = vector.load %arg16[%c0_32, %c0_33] : memref<32x512xf32, #tpu.memory_space<vmem>>, vector<8x512xf32>
    %31 = arith.truncf %30 : vector<8x512xf32> to vector<8x512xbf16>
    %cst_34 = arith.constant dense<0.000000e+00> : vector<8x512xf32>
    %32 = tpu.matmul %29, %31, %cst_34 {dimension_numbers = #tpu.dot_dimension_numbers<[1], [0], [0], [1], [0, 0, 1, 1], [], []>} : vector<8x8xbf16>, vector<8x512xbf16>, vector<8x512xf32> -> vector<8x512xf32>
    %c0_35 = arith.constant 0 : index
    %c0_36 = arith.constant 0 : index
    %33 = vector.load %arg6[%c0_35, %c0_36] : memref<8x1xf32, #tpu.memory_space<vmem>>, vector<8x1xf32>
    %34 = vector.broadcast %33 : vector<8x1xf32> to vector<8x512xf32>
    %35 = arith.addf %32, %34 : vector<8x512xf32>
    %cst_37 = arith.constant 0.000000e+00 : f32
    %36 = vector.broadcast %cst_37 : f32 to vector<8x512xf32>
    %37 = arith.maximumf %35, %36 : vector<8x512xf32>
    %c0_38 = arith.constant 0 : index
    %c0_39 = arith.constant 0 : index
    %38 = vector.load %arg16[%c0_38, %c0_39] : memref<32x512xf32, #tpu.memory_space<vmem>>, vector<8x512xf32>
    tpu.vector_store %arg16[%c0_38, %c0_39], %37 {strides = array<i32>} : memref<32x512xf32, #tpu.memory_space<vmem>>, vector<8x512xf32>,
    %c16 = arith.constant 16 : index
    %c0_40 = arith.constant 0 : index
    %39 = vector.load %arg16[%c16, %c0_40] : memref<32x512xf32, #tpu.memory_space<vmem>>, vector<8x512xf32>
    tpu.vector_store %arg16[%c16, %c0_40], %37 {strides = array<i32>} : memref<32x512xf32, #tpu.memory_space<vmem>>, vector<8x512xf32>,
    %c0_41 = arith.constant 0 : index
    %c0_42 = arith.constant 0 : index
    %40 = vector.load %arg7[%c0_41, %c0_42] : memref<8x24xbf16, #tpu.memory_space<vmem>>, vector<8x24xbf16>
    %c0_43 = arith.constant 0 : index
    %c0_44 = arith.constant 0 : index
    %41 = vector.load %arg16[%c0_43, %c0_44] : memref<32x512xf32, #tpu.memory_space<vmem>>, vector<24x512xf32>
    %42 = arith.truncf %41 : vector<24x512xf32> to vector<24x512xbf16>
    %cst_45 = arith.constant dense<0.000000e+00> : vector<8x512xf32>
    %43 = tpu.matmul %40, %42, %cst_45 {dimension_numbers = #tpu.dot_dimension_numbers<[1], [0], [0], [1], [0, 0, 1, 1], [], []>} : vector<8x24xbf16>, vector<24x512xbf16>, vector<8x512xf32> -> vector<8x512xf32>
    %c0_46 = arith.constant 0 : index
    %c0_47 = arith.constant 0 : index
    %44 = vector.load %arg8[%c0_46, %c0_47] : memref<8x1xf32, #tpu.memory_space<vmem>>, vector<8x1xf32>
    %45 = vector.broadcast %44 : vector<8x1xf32> to vector<8x512xf32>
    %46 = arith.addf %43, %45 : vector<8x512xf32>
    %cst_48 = arith.constant 0.000000e+00 : f32
    %47 = vector.broadcast %cst_48 : f32 to vector<8x512xf32>
    %48 = arith.maximumf %46, %47 : vector<8x512xf32>
    %c0_49 = arith.constant 0 : index
    %c0_50 = arith.constant 0 : index
    %49 = vector.load %arg16[%c0_49, %c0_50] : memref<32x512xf32, #tpu.memory_space<vmem>>, vector<8x512xf32>
    tpu.vector_store %arg16[%c0_49, %c0_50], %48 {strides = array<i32>} : memref<32x512xf32, #tpu.memory_space<vmem>>, vector<8x512xf32>,
    %c0_51 = arith.constant 0 : index
    %c0_52 = arith.constant 0 : index
    %50 = vector.load %arg9[%c0_51, %c0_52] : memref<8x8xbf16, #tpu.memory_space<vmem>>, vector<8x8xbf16>
    %c0_53 = arith.constant 0 : index
    %c0_54 = arith.constant 0 : index
    %51 = vector.load %arg16[%c0_53, %c0_54] : memref<32x512xf32, #tpu.memory_space<vmem>>, vector<8x512xf32>
    %52 = arith.truncf %51 : vector<8x512xf32> to vector<8x512xbf16>
    %cst_55 = arith.constant dense<0.000000e+00> : vector<8x512xf32>
    %53 = tpu.matmul %50, %52, %cst_55 {dimension_numbers = #tpu.dot_dimension_numbers<[1], [0], [0], [1], [0, 0, 1, 1], [], []>} : vector<8x8xbf16>, vector<8x512xbf16>, vector<8x512xf32> -> vector<8x512xf32>
    %c0_56 = arith.constant 0 : index
    %c0_57 = arith.constant 0 : index
    %54 = vector.load %arg10[%c0_56, %c0_57] : memref<8x1xf32, #tpu.memory_space<vmem>>, vector<8x1xf32>
    %55 = vector.broadcast %54 : vector<8x1xf32> to vector<8x512xf32>
    %56 = arith.addf %53, %55 : vector<8x512xf32>
    %cst_58 = arith.constant 0.000000e+00 : f32
    %57 = vector.broadcast %cst_58 : f32 to vector<8x512xf32>
    %58 = arith.maximumf %56, %57 : vector<8x512xf32>
    %c0_59 = arith.constant 0 : index
    %c0_60 = arith.constant 0 : index
    %59 = vector.load %arg16[%c0_59, %c0_60] : memref<32x512xf32, #tpu.memory_space<vmem>>, vector<8x512xf32>
    tpu.vector_store %arg16[%c0_59, %c0_60], %58 {strides = array<i32>} : memref<32x512xf32, #tpu.memory_space<vmem>>, vector<8x512xf32>,
    %c24 = arith.constant 24 : index
    %c0_61 = arith.constant 0 : index
    %60 = vector.load %arg16[%c24, %c0_61] : memref<32x512xf32, #tpu.memory_space<vmem>>, vector<8x512xf32>
    tpu.vector_store %arg16[%c24, %c0_61], %58 {strides = array<i32>} : memref<32x512xf32, #tpu.memory_space<vmem>>, vector<8x512xf32>,
    %c0_62 = arith.constant 0 : index
    %c0_63 = arith.constant 0 : index
    %61 = vector.load %arg11[%c0_62, %c0_63] : memref<8x32xbf16, #tpu.memory_space<vmem>>, vector<8x32xbf16>
    %c0_64 = arith.constant 0 : index
    %c0_65 = arith.constant 0 : index
    %62 = vector.load %arg16[%c0_64, %c0_65] : memref<32x512xf32, #tpu.memory_space<vmem>>, vector<32x512xf32>
    %63 = arith.truncf %62 : vector<32x512xf32> to vector<32x512xbf16>
    %cst_66 = arith.constant dense<0.000000e+00> : vector<8x512xf32>
    %64 = tpu.matmul %61, %63, %cst_66 {dimension_numbers = #tpu.dot_dimension_numbers<[1], [0], [0], [1], [0, 0, 1, 1], [], []>} : vector<8x32xbf16>, vector<32x512xbf16>, vector<8x512xf32> -> vector<8x512xf32>
    %c0_67 = arith.constant 0 : index
    %c0_68 = arith.constant 0 : index
    %65 = vector.load %arg12[%c0_67, %c0_68] : memref<8x1xf32, #tpu.memory_space<vmem>>, vector<8x1xf32>
    %66 = vector.broadcast %65 : vector<8x1xf32> to vector<8x512xf32>
    %67 = arith.addf %64, %66 : vector<8x512xf32>
    %cst_69 = arith.constant 0.000000e+00 : f32
    %68 = vector.broadcast %cst_69 : f32 to vector<8x512xf32>
    %69 = arith.maximumf %67, %68 : vector<8x512xf32>
    %c0_70 = arith.constant 0 : index
    %c0_71 = arith.constant 0 : index
    %70 = vector.load %arg16[%c0_70, %c0_71] : memref<32x512xf32, #tpu.memory_space<vmem>>, vector<8x512xf32>
    tpu.vector_store %arg16[%c0_70, %c0_71], %69 {strides = array<i32>} : memref<32x512xf32, #tpu.memory_space<vmem>>, vector<8x512xf32>,
    %c0_72 = arith.constant 0 : index
    %c0_73 = arith.constant 0 : index
    %71 = vector.load %arg13[%c0_72, %c0_73] : memref<8x8xbf16, #tpu.memory_space<vmem>>, vector<8x8xbf16>
    %c0_74 = arith.constant 0 : index
    %c0_75 = arith.constant 0 : index
    %72 = vector.load %arg16[%c0_74, %c0_75] : memref<32x512xf32, #tpu.memory_space<vmem>>, vector<8x512xf32>
    %73 = arith.truncf %72 : vector<8x512xf32> to vector<8x512xbf16>
    %cst_76 = arith.constant dense<0.000000e+00> : vector<8x512xf32>
    %74 = tpu.matmul %71, %73, %cst_76 {dimension_numbers = #tpu.dot_dimension_numbers<[1], [0], [0], [1], [0, 0, 1, 1], [], []>} : vector<8x8xbf16>, vector<8x512xbf16>, vector<8x512xf32> -> vector<8x512xf32>
    %c0_77 = arith.constant 0 : index
    %c0_78 = arith.constant 0 : index
    %75 = vector.load %arg14[%c0_77, %c0_78] : memref<8x1xf32, #tpu.memory_space<vmem>>, vector<8x1xf32>
    %76 = vector.broadcast %75 : vector<8x1xf32> to vector<8x512xf32>
    %77 = arith.addf %74, %76 : vector<8x512xf32>
    %78 = vector.extract_strided_slice %77 {offsets = [0, 0], sizes = [8, 256], strides = [1, 1]} : vector<8x512xf32> to vector<8x256xf32>
    %c0_79 = arith.constant 0 : index
    %c0_80 = arith.constant 0 : index
    %c0_81 = arith.constant 0 : index
    %79 = vector.load %arg15[%c0_79, %c0_80, %c0_81] : memref<2x8x256xf32, #tpu.memory_space<vmem>>, vector<1x8x256xf32>
    %80 = vector.shape_cast %79 : vector<1x8x256xf32> to vector<8x256xf32>
    %81 = vector.shape_cast %78 : vector<8x256xf32> to vector<1x8x256xf32>
    tpu.vector_store %arg15[%c0_79, %c0_80, %c0_81], %81 {strides = array<i32>} : memref<2x8x256xf32, #tpu.memory_space<vmem>>, vector<1x8x256xf32>,
    %82 = vector.extract_strided_slice %77 {offsets = [0, 256], sizes = [8, 256], strides = [1, 1]} : vector<8x512xf32> to vector<8x256xf32>
    %c1_82 = arith.constant 1 : index
    %c0_83 = arith.constant 0 : index
    %c0_84 = arith.constant 0 : index
    %83 = vector.load %arg15[%c1_82, %c0_83, %c0_84] : memref<2x8x256xf32, #tpu.memory_space<vmem>>, vector<1x8x256xf32>
    %84 = vector.shape_cast %83 : vector<1x8x256xf32> to vector<8x256xf32>
    %85 = vector.shape_cast %82 : vector<8x256xf32> to vector<1x8x256xf32>
    tpu.vector_store %arg15[%c1_82, %c0_83, %c0_84], %85 {strides = array<i32>} : memref<2x8x256xf32, #tpu.memory_space<vmem>>, vector<1x8x256xf32>,
    return
  }
}

</mosaic_0001>

<llo_original>
// kernel: evonet_forward.1
$region0: #{evonet_forward.1}
  #allocation0 [shape = 'u32[]', space=smem, size = 0x4, offset = 0x4, fixed_abs, tag = 'smem constant byte address 0x4 - core index']
  #allocation1 [shape = 'u32[144,128]{1,0:T(1,128)}', space=vmem, size = 0x12000, scoped, tag = 'internal scratch']
  #allocation2 [shape = 'f32[32,512]{1,0:T(8,128)}', space=vmem, size = 0x10000, scoped, tag = 'scratch operand']
  %s0 = inlined_call_operand.vmem [shape: f32[2,4,256], index: 0, kind: input, shape index: {}]
  %s1 = inlined_call_operand.vmem [shape: bf16[8,8], index: 1, kind: input, shape index: {}]
  %s2 = inlined_call_operand.vmem [shape: f32[8,1], index: 2, kind: input, shape index: {}]
  %s3 = inlined_call_operand.vmem [shape: bf16[8,16], index: 3, kind: input, shape index: {}]
  %s4 = inlined_call_operand.vmem [shape: f32[8,1], index: 4, kind: input, shape index: {}]
  %s5 = inlined_call_operand.vmem [shape: bf16[8,8], index: 5, kind: input, shape index: {}]
  %s6 = inlined_call_operand.vmem [shape: f32[8,1], index: 6, kind: input, shape index: {}]
  %s7 = inlined_call_operand.vmem [shape: bf16[8,24], index: 7, kind: input, shape index: {}]
  %s8 = inlined_call_operand.vmem [shape: f32[8,1], index: 8, kind: input, shape index: {}]
  %s9 = inlined_call_operand.vmem [shape: bf16[8,8], index: 9, kind: input, shape index: {}]
  %s10 = inlined_call_operand.vmem [shape: f32[8,1], index: 10, kind: input, shape index: {}]
  %s11 = inlined_call_operand.vmem [shape: bf16[8,32], index: 11, kind: input, shape index: {}]
  %s12 = inlined_call_operand.vmem [shape: f32[8,1], index: 12, kind: input, shape index: {}]
  %s13 = inlined_call_operand.vmem [shape: bf16[8,8], index: 13, kind: input, shape index: {}]
  %s14 = inlined_call_operand.vmem [shape: f32[8,1], index: 14, kind: input, shape index: {}]
  %s15 = inlined_call_operand.vmem [shape: f32[2,8,256], index: 15, kind: output, shape index: {}]
  %s16 = sld [smem:[#allocation0]]
  $region70: #{evonet_forward.1} parent=0
    _
  %s18 = ssub.s32 1, %s16
  %s19 = scalar_select 0, %s18, %s16
  // Predicated region
  $region2: #{evonet_forward.1} parent=0 // pred_check
    _
  $region3: #{evonet_forward.1} parent=0 // pred_check_branch
    %21 = sbr.rel (0) target = $region5
  $region4: #{evonet_forward.1} parent=0 // pred_region
    _
  $region5: #{evonet_forward.1} parent=0 // pred_fallthru
    _
  // Predicated region
  $region6: #{evonet_forward.1} parent=0 // pred_check
    _
  $region7: #{evonet_forward.1} parent=0 // pred_check_branch
    %23 = sbr.rel (0) target = $region9
  $region8: #{evonet_forward.1} parent=0 // pred_region
    _
  $region9: #{evonet_forward.1} parent=0 // pred_fallthru
    _
  // Predicated region
  $region10: #{evonet_forward.1} parent=0 // pred_check
    _
  $region11: #{evonet_forward.1} parent=0 // pred_check_branch
    %25 = sbr.rel (0) target = $region13
  $region12: #{evonet_forward.1} parent=0 // pred_region
    _
  $region13: #{evonet_forward.1} parent=0 // pred_fallthru
    _
  // Predicated region
  $region14: #{evonet_forward.1} parent=0 // pred_check
    _
  $region15: #{evonet_forward.1} parent=0 // pred_check_branch
    %27 = sbr.rel (0) target = $region17
  $region16: #{evonet_forward.1} parent=0 // pred_region
    _
  $region17: #{evonet_forward.1} parent=0 // pred_fallthru
    _
  // Predicated region
  $region18: #{evonet_forward.1} parent=0 // pred_check
    _
  $region19: #{evonet_forward.1} parent=0 // pred_check_branch
    %29 = sbr.rel (0) target = $region21
  $region20: #{evonet_forward.1} parent=0 // pred_region
    _
  $region21: #{evonet_forward.1} parent=0 // pred_fallthru
    _
  // Predicated region
  $region22: #{evonet_forward.1} parent=0 // pred_check
    _
  $region23: #{evonet_forward.1} parent=0 // pred_check_branch
    %31 = sbr.rel (0) target = $region25
  $region24: #{evonet_forward.1} parent=0 // pred_region
    _
  $region25: #{evonet_forward.1} parent=0 // pred_fallthru
    _
  // Predicated region
  $region26: #{evonet_forward.1} parent=0 // pred_check
    _
  $region27: #{evonet_forward.1} parent=0 // pred_check_branch
    %33 = sbr.rel (0) target = $region29
  $region28: #{evonet_forward.1} parent=0 // pred_region
    _
  $region29: #{evonet_forward.1} parent=0 // pred_fallthru
    _
  // Predicated region
  $region30: #{evonet_forward.1} parent=0 // pred_check
    _
  $region31: #{evonet_forward.1} parent=0 // pred_check_branch
    %35 = sbr.rel (0) target = $region33
  $region32: #{evonet_forward.1} parent=0 // pred_region
    _
  $region33: #{evonet_forward.1} parent=0 // pred_fallthru
    _
  // Predicated region
  $region34: #{evonet_forward.1} parent=0 // pred_check
    _
  $region35: #{evonet_forward.1} parent=0 // pred_check_branch
    %37 = sbr.rel (0) target = $region37
  $region36: #{evonet_forward.1} parent=0 // pred_region
    _
  $region37: #{evonet_forward.1} parent=0 // pred_fallthru
    _
  // Predicated region
  $region38: #{evonet_forward.1} parent=0 // pred_check
    _
  $region39: #{evonet_forward.1} parent=0 // pred_check_branch
    %39 = sbr.rel (0) target = $region41
  $region40: #{evonet_forward.1} parent=0 // pred_region
    _
  $region41: #{evonet_forward.1} parent=0 // pred_fallthru
    _
  // Predicated region
  $region42: #{evonet_forward.1} parent=0 // pred_check
    _
  $region43: #{evonet_forward.1} parent=0 // pred_check_branch
    %41 = sbr.rel (0) target = $region45
  $region44: #{evonet_forward.1} parent=0 // pred_region
    _
  $region45: #{evonet_forward.1} parent=0 // pred_fallthru
    _
  // Predicated region
  $region46: #{evonet_forward.1} parent=0 // pred_check
    _
  $region47: #{evonet_forward.1} parent=0 // pred_check_branch
    %43 = sbr.rel (0) target = $region49
  $region48: #{evonet_forward.1} parent=0 // pred_region
    _
  $region49: #{evonet_forward.1} parent=0 // pred_fallthru
    _
  // Predicated region
  $region50: #{evonet_forward.1} parent=0 // pred_check
    _
  $region51: #{evonet_forward.1} parent=0 // pred_check_branch
    %45 = sbr.rel (0) target = $region53
  $region52: #{evonet_forward.1} parent=0 // pred_region
    _
  $region53: #{evonet_forward.1} parent=0 // pred_fallthru
    _
  // Predicated region
  $region54: #{evonet_forward.1} parent=0 // pred_check
    _
  $region55: #{evonet_forward.1} parent=0 // pred_check_branch
    %47 = sbr.rel (0) target = $region57
  $region56: #{evonet_forward.1} parent=0 // pred_region
    _
  $region57: #{evonet_forward.1} parent=0 // pred_fallthru
    _
  // Predicated region
  $region58: #{evonet_forward.1} parent=0 // pred_check
    _
  $region59: #{evonet_forward.1} parent=0 // pred_check_branch
    %49 = sbr.rel (0) target = $region61
  $region60: #{evonet_forward.1} parent=0 // pred_region
    _
  $region61: #{evonet_forward.1} parent=0 // pred_fallthru
    _
  %v51 = vld [vmem:[%s0] sm:$0xff]
  %v53 = vcombine.high %v51, %v51
  %55 = vst [vmem:[#allocation2] sm:$0xf] %v51
  %56 = vst [vmem:[#allocation2 + $0x8] sm:$0xf] %v53
  %v57 = vcombine.low %v51, %v51
  %59 = vst [vmem:[#allocation2] sm:$0xf0] %v57
  %60 = vst [vmem:[#allocation2 + $0x8] sm:$0xf0] %v51
  %s61 = scalar_lea.vmem %s0, 8
  %v62 = vld [vmem:[%s61] sm:$0xff]
  %v64 = vcombine.high %v62, %v62
  %66 = vst [vmem:[#allocation2 + $0x10] sm:$0xf] %v62
  %67 = vst [vmem:[#allocation2 + $0x18] sm:$0xf] %v64
  %v68 = vcombine.low %v62, %v62
  %70 = vst [vmem:[#allocation2 + $0x10] sm:$0xf0] %v68
  %71 = vst [vmem:[#allocation2 + $0x18] sm:$0xf0] %v62
  %v72 = vld [vmem:[%s1] sm:$0xf]
  %v73 = vld [vmem:[#allocation2] sm:$0xff]
  %v74 = vld [vmem:[#allocation2 + $0x8] sm:$0xff]
  %v75 = vld [vmem:[#allocation2 + $0x10] sm:$0xff]
  %v76 = vld [vmem:[#allocation2 + $0x18] sm:$0xff]
  %v77 = vpack.c.bf16 %v73, %v73
  %v78 = vpack.c.bf16 %v74, %v74
  %v79 = vpack.c.bf16 %v75, %v75
  %v80 = vpack.c.bf16 %v76, %v76
  %v81 = vld [vmem:[%s2] sm:$0xff]
  %83 = vset.pattern.permute.xlu0 0
  %84 = vperm.xlu0 %83, %v81
  %v85 = vpop.permute.xlu0 %84
  %vm87 = vcmask 64512
  %v89 = vsel %vm87, %v72, 0
  %vm91 = vcmask 1043456
  %v93 = vsel %vm91, %v77, 0
  %v96 = vsel %vm91, %v78, 0
  %v99 = vsel %vm91, %v79, 0
  %v102 = vsel %vm91, %v80, 0
  %104 = vmatprep.subr.bf16.mxu0 %v96
  %105 = vmatpush1.bf16.msra.mxu0 %v93
  %106 = vmatprep.subr.bf16.mxu0 0
  %107 = vmatpush1.bf16.msra.mxu0 0
  %108 = vmatprep.subr.bf16.mxu0 0
  %109 = vmatpush1.bf16.msra.mxu0 0
  %110 = vmatprep.subr.bf16.mxu0 0
  %111 = vmatpush1.bf16.msra.mxu0 0
  %112 = vmatprep.subr.bf16.mxu0 0
  %113 = vmatpush1.bf16.msra.mxu0 0
  %114 = vmatprep.subr.bf16.mxu0 0
  %115 = vmatpush1.bf16.msra.mxu0 0
  %116 = vmatprep.subr.bf16.mxu0 0
  %117 = vmatpush1.bf16.msra.mxu0 0
  %118 = vmatprep.subr.bf16.mxu0 0
  %119 = vmatpush1.bf16.msra.mxu0 0
  %120 = vmatprep.subr.bf16.mxu0 0
  %121 = vmatpush1.bf16.msra.mxu0 0
  %122 = vmatprep.subr.bf16.mxu0 0
  %123 = vmatpush1.bf16.msra.mxu0 0
  %124 = vmatprep.subr.bf16.mxu0 0
  %125 = vmatpush1.bf16.msra.mxu0 0
  %126 = vmatprep.subr.bf16.mxu0 0
  %127 = vmatpush1.bf16.msra.mxu0 0
  %128 = vmatprep.subr.bf16.mxu0 0
  %129 = vmatpush1.bf16.msra.mxu0 0
  %130 = vmatprep.subr.bf16.mxu0 0
  %131 = vmatpush1.bf16.msra.mxu0 0
  %132 = vmatprep.subr.bf16.mxu0 0
  %133 = vmatpush1.bf16.msra.mxu0 0
  %134 = vmatprep.subr.bf16.mxu0 0
  %135 = vmatpush1.bf16.msra.mxu0 0
  %136 = vmatprep.mubr.bf16.mxu0 0
  %137 = vmatmul.mubr.bf16.gmra.mrb[0].mxu0 %v89
  %v138 = vpop.f32.mrb[0].mxu0
  %v139 = vadd.f32 %v85, %v138
  %v140 = vpop.f32.mrb[0].mxu0
  %v141 = vadd.f32 %v85, %v140
  %v142 = vpop.f32.mrb[0].mxu0
  %v143 = vpop.f32.mrb[0].mxu0
  %144 = vdwg.mxu0
  %145 = vmatprep.subr.bf16.mxu0 %v102
  %146 = vmatpush1.bf16.msra.mxu0 %v99
  %147 = vmatprep.subr.bf16.mxu0 0
  %148 = vmatpush1.bf16.msra.mxu0 0
  %149 = vmatprep.subr.bf16.mxu0 0
  %150 = vmatpush1.bf16.msra.mxu0 0
  %151 = vmatprep.subr.bf16.mxu0 0
  %152 = vmatpush1.bf16.msra.mxu0 0
  %153 = vmatprep.subr.bf16.mxu0 0
  %154 = vmatpush1.bf16.msra.mxu0 0
  %155 = vmatprep.subr.bf16.mxu0 0
  %156 = vmatpush1.bf16.msra.mxu0 0
  %157 = vmatprep.subr.bf16.mxu0 0
  %158 = vmatpush1.bf16.msra.mxu0 0
  %159 = vmatprep.subr.bf16.mxu0 0
  %160 = vmatpush1.bf16.msra.mxu0 0
  %161 = vmatprep.subr.bf16.mxu0 0
  %162 = vmatpush1.bf16.msra.mxu0 0
  %163 = vmatprep.subr.bf16.mxu0 0
  %164 = vmatpush1.bf16.msra.mxu0 0
  %165 = vmatprep.subr.bf16.mxu0 0
  %166 = vmatpush1.bf16.msra.mxu0 0
  %167 = vmatprep.subr.bf16.mxu0 0
  %168 = vmatpush1.bf16.msra.mxu0 0
  %169 = vmatprep.subr.bf16.mxu0 0
  %170 = vmatpush1.bf16.msra.mxu0 0
  %171 = vmatprep.subr.bf16.mxu0 0
  %172 = vmatpush1.bf16.msra.mxu0 0
  %173 = vmatprep.subr.bf16.mxu0 0
  %174 = vmatpush1.bf16.msra.mxu0 0
  %175 = vmatprep.subr.bf16.mxu0 0
  %176 = vmatpush1.bf16.msra.mxu0 0
  %177 = vmatprep.mubr.bf16.mxu0 0
  %178 = vmatmul.mubr.bf16.gmra.mrb[0].mxu0 %v89
  %v179 = vpop.f32.mrb[0].mxu0
  %v180 = vadd.f32 %v85, %v179
  %v181 = vpop.f32.mrb[0].mxu0
  %v182 = vadd.f32 %v85, %v181
  %v183 = vpop.f32.mrb[0].mxu0
  %v184 = vpop.f32.mrb[0].mxu0
  %185 = vdwg.mxu0
  %v186 = vmax.f32 %v139, 0.0
  %v187 = vmax.f32 %v141, 0.0
  %v188 = vmax.f32 %v180, 0.0
  %v189 = vmax.f32 %v182, 0.0
  %190 = vst [vmem:[#allocation2] sm:$0xff] %v186
  %191 = vst [vmem:[#allocation2 + $0x8] sm:$0xff] %v187
  %192 = vst [vmem:[#allocation2 + $0x10] sm:$0xff] %v188
  %193 = vst [vmem:[#allocation2 + $0x18] sm:$0xff] %v189
  %194 = vst [vmem:[#allocation2 + $0x20] sm:$0xff] %v186
  %195 = vst [vmem:[#allocation2 + $0x28] sm:$0xff] %v187
  %196 = vst [vmem:[#allocation2 + $0x30] sm:$0xff] %v188
  %197 = vst [vmem:[#allocation2 + $0x38] sm:$0xff] %v189
  %v198 = vld [vmem:[%s3] sm:$0xf]
  %v199 = vld [vmem:[#allocation2] sm:$0xff]
  %v200 = vld [vmem:[#allocation2 + $0x8] sm:$0xff]
  %v201 = vld [vmem:[#allocation2 + $0x10] sm:$0xff]
  %v202 = vld [vmem:[#allocation2 + $0x18] sm:$0xff]
  %v203 = vld [vmem:[#allocation2 + $0x20] sm:$0xff]
  %v204 = vld [vmem:[#allocation2 + $0x28] sm:$0xff]
  %v205 = vld [vmem:[#allocation2 + $0x30] sm:$0xff]
  %v206 = vld [vmem:[#allocation2 + $0x38] sm:$0xff]
  %v207 = vpack.c.bf16 %v203, %v199
  %v208 = vpack.c.bf16 %v204, %v200
  %v209 = vpack.c.bf16 %v205, %v201
  %v210 = vpack.c.bf16 %v206, %v202
  %v211 = vld [vmem:[%s4] sm:$0xff]
  %213 = vset.pattern.permute.xlu0 0
  %214 = vperm.xlu0 %213, %v211
  %v215 = vpop.permute.xlu0 %214
  %vm217 = vcmask 130048
  %v219 = vsel %vm217, %v198, 0
  %221 = vmatprep.subr.bf16.mxu0 %v208
  %222 = vmatpush1.bf16.msra.mxu0 %v207
  %223 = vmatprep.subr.bf16.mxu0 0
  %224 = vmatpush1.bf16.msra.mxu0 0
  %225 = vmatprep.subr.bf16.mxu0 0
  %226 = vmatpush1.bf16.msra.mxu0 0
  %227 = vmatprep.subr.bf16.mxu0 0
  %228 = vmatpush1.bf16.msra.mxu0 0
  %229 = vmatprep.subr.bf16.mxu0 0
  %230 = vmatpush1.bf16.msra.mxu0 0
  %231 = vmatprep.subr.bf16.mxu0 0
  %232 = vmatpush1.bf16.msra.mxu0 0
  %233 = vmatprep.subr.bf16.mxu0 0
  %234 = vmatpush1.bf16.msra.mxu0 0
  %235 = vmatprep.subr.bf16.mxu0 0
  %236 = vmatpush1.bf16.msra.mxu0 0
  %237 = vmatprep.subr.bf16.mxu0 0
  %238 = vmatpush1.bf16.msra.mxu0 0
  %239 = vmatprep.subr.bf16.mxu0 0
  %240 = vmatpush1.bf16.msra.mxu0 0
  %241 = vmatprep.subr.bf16.mxu0 0
  %242 = vmatpush1.bf16.msra.mxu0 0
  %243 = vmatprep.subr.bf16.mxu0 0
  %244 = vmatpush1.bf16.msra.mxu0 0
  %245 = vmatprep.subr.bf16.mxu0 0
  %246 = vmatpush1.bf16.msra.mxu0 0
  %247 = vmatprep.subr.bf16.mxu0 0
  %248 = vmatpush1.bf16.msra.mxu0 0
  %249 = vmatprep.subr.bf16.mxu0 0
  %250 = vmatpush1.bf16.msra.mxu0 0
  %251 = vmatprep.subr.bf16.mxu0 0
  %252 = vmatpush1.bf16.msra.mxu0 0
  %253 = vmatprep.mubr.bf16.mxu0 0
  %254 = vmatmul.mubr.bf16.gmra.mrb[0].mxu0 %v219
  %v255 = vpop.f32.mrb[0].mxu0
  %v256 = vadd.f32 %v215, %v255
  %v257 = vpop.f32.mrb[0].mxu0
  %v258 = vadd.f32 %v215, %v257
  %v259 = vpop.f32.mrb[0].mxu0
  %v260 = vpop.f32.mrb[0].mxu0
  %261 = vdwg.mxu0
  %262 = vmatprep.subr.bf16.mxu0 %v210
  %263 = vmatpush1.bf16.msra.mxu0 %v209
  %264 = vmatprep.subr.bf16.mxu0 0
  %265 = vmatpush1.bf16.msra.mxu0 0
  %266 = vmatprep.subr.bf16.mxu0 0
  %267 = vmatpush1.bf16.msra.mxu0 0
  %268 = vmatprep.subr.bf16.mxu0 0
  %269 = vmatpush1.bf16.msra.mxu0 0
  %270 = vmatprep.subr.bf16.mxu0 0
  %271 = vmatpush1.bf16.msra.mxu0 0
  %272 = vmatprep.subr.bf16.mxu0 0
  %273 = vmatpush1.bf16.msra.mxu0 0
  %274 = vmatprep.subr.bf16.mxu0 0
  %275 = vmatpush1.bf16.msra.mxu0 0
  %276 = vmatprep.subr.bf16.mxu0 0
  %277 = vmatpush1.bf16.msra.mxu0 0
  %278 = vmatprep.subr.bf16.mxu0 0
  %279 = vmatpush1.bf16.msra.mxu0 0
  %280 = vmatprep.subr.bf16.mxu0 0
  %281 = vmatpush1.bf16.msra.mxu0 0
  %282 = vmatprep.subr.bf16.mxu0 0
  %283 = vmatpush1.bf16.msra.mxu0 0
  %284 = vmatprep.subr.bf16.mxu0 0
  %285 = vmatpush1.bf16.msra.mxu0 0
  %286 = vmatprep.subr.bf16.mxu0 0
  %287 = vmatpush1.bf16.msra.mxu0 0
  %288 = vmatprep.subr.bf16.mxu0 0
  %289 = vmatpush1.bf16.msra.mxu0 0
  %290 = vmatprep.subr.bf16.mxu0 0
  %291 = vmatpush1.bf16.msra.mxu0 0
  %292 = vmatprep.subr.bf16.mxu0 0
  %293 = vmatpush1.bf16.msra.mxu0 0
  %294 = vmatprep.mubr.bf16.mxu0 0
  %295 = vmatmul.mubr.bf16.gmra.mrb[0].mxu0 %v219
  %v296 = vpop.f32.mrb[0].mxu0
  %v297 = vadd.f32 %v215, %v296
  %v298 = vpop.f32.mrb[0].mxu0
  %v299 = vadd.f32 %v215, %v298
  %v300 = vpop.f32.mrb[0].mxu0
  %v301 = vpop.f32.mrb[0].mxu0
  %302 = vdwg.mxu0
  %v303 = vmax.f32 %v256, 0.0
  %v304 = vmax.f32 %v258, 0.0
  %v305 = vmax.f32 %v297, 0.0
  %v306 = vmax.f32 %v299, 0.0
  %307 = vst [vmem:[#allocation2] sm:$0xff] %v303
  %308 = vst [vmem:[#allocation2 + $0x8] sm:$0xff] %v304
  %309 = vst [vmem:[#allocation2 + $0x10] sm:$0xff] %v305
  %310 = vst [vmem:[#allocation2 + $0x18] sm:$0xff] %v306
  %v311 = vld [vmem:[%s5] sm:$0xf]
  %v312 = vld [vmem:[#allocation2] sm:$0xff]
  %v313 = vld [vmem:[#allocation2 + $0x8] sm:$0xff]
  %v314 = vld [vmem:[#allocation2 + $0x10] sm:$0xff]
  %v315 = vld [vmem:[#allocation2 + $0x18] sm:$0xff]
  %v316 = vpack.c.bf16 %v312, %v312
  %v317 = vpack.c.bf16 %v313, %v313
  %v318 = vpack.c.bf16 %v314, %v314
  %v319 = vpack.c.bf16 %v315, %v315
  %v320 = vld [vmem:[%s6] sm:$0xff]
  %322 = vset.pattern.permute.xlu0 0
  %323 = vperm.xlu0 %322, %v320
  %v324 = vpop.permute.xlu0 %323
  %v327 = vsel %vm87, %v311, 0
  %v330 = vsel %vm91, %v316, 0
  %v333 = vsel %vm91, %v317, 0
  %v336 = vsel %vm91, %v318, 0
  %v339 = vsel %vm91, %v319, 0
  %341 = vmatprep.subr.bf16.mxu0 %v333
  %342 = vmatpush1.bf16.msra.mxu0 %v330
  %343 = vmatprep.subr.bf16.mxu0 0
  %344 = vmatpush1.bf16.msra.mxu0 0
  %345 = vmatprep.subr.bf16.mxu0 0
  %346 = vmatpush1.bf16.msra.mxu0 0
  %347 = vmatprep.subr.bf16.mxu0 0
  %348 = vmatpush1.bf16.msra.mxu0 0
  %349 = vmatprep.subr.bf16.mxu0 0
  %350 = vmatpush1.bf16.msra.mxu0 0
  %351 = vmatprep.subr.bf16.mxu0 0
  %352 = vmatpush1.bf16.msra.mxu0 0
  %353 = vmatprep.subr.bf16.mxu0 0
  %354 = vmatpush1.bf16.msra.mxu0 0
  %355 = vmatprep.subr.bf16.mxu0 0
  %356 = vmatpush1.bf16.msra.mxu0 0
  %357 = vmatprep.subr.bf16.mxu0 0
  %358 = vmatpush1.bf16.msra.mxu0 0
  %359 = vmatprep.subr.bf16.mxu0 0
  %360 = vmatpush1.bf16.msra.mxu0 0
  %361 = vmatprep.subr.bf16.mxu0 0
  %362 = vmatpush1.bf16.msra.mxu0 0
  %363 = vmatprep.subr.bf16.mxu0 0
  %364 = vmatpush1.bf16.msra.mxu0 0
  %365 = vmatprep.subr.bf16.mxu0 0
  %366 = vmatpush1.bf16.msra.mxu0 0
  %367 = vmatprep.subr.bf16.mxu0 0
  %368 = vmatpush1.bf16.msra.mxu0 0
  %369 = vmatprep.subr.bf16.mxu0 0
  %370 = vmatpush1.bf16.msra.mxu0 0
  %371 = vmatprep.subr.bf16.mxu0 0
  %372 = vmatpush1.bf16.msra.mxu0 0
  %373 = vmatprep.mubr.bf16.mxu0 0
  %374 = vmatmul.mubr.bf16.gmra.mrb[0].mxu0 %v327
  %v375 = vpop.f32.mrb[0].mxu0
  %v376 = vadd.f32 %v324, %v375
  %v377 = vpop.f32.mrb[0].mxu0
  %v378 = vadd.f32 %v324, %v377
  %v379 = vpop.f32.mrb[0].mxu0
  %v380 = vpop.f32.mrb[0].mxu0
  %381 = vdwg.mxu0
  %382 = vmatprep.subr.bf16.mxu0 %v339
  %383 = vmatpush1.bf16.msra.mxu0 %v336
  %384 = vmatprep.subr.bf16.mxu0 0
  %385 = vmatpush1.bf16.msra.mxu0 0
  %386 = vmatprep.subr.bf16.mxu0 0
  %387 = vmatpush1.bf16.msra.mxu0 0
  %388 = vmatprep.subr.bf16.mxu0 0
  %389 = vmatpush1.bf16.msra.mxu0 0
  %390 = vmatprep.subr.bf16.mxu0 0
  %391 = vmatpush1.bf16.msra.mxu0 0
  %392 = vmatprep.subr.bf16.mxu0 0
  %393 = vmatpush1.bf16.msra.mxu0 0
  %394 = vmatprep.subr.bf16.mxu0 0
  %395 = vmatpush1.bf16.msra.mxu0 0
  %396 = vmatprep.subr.bf16.mxu0 0
  %397 = vmatpush1.bf16.msra.mxu0 0
  %398 = vmatprep.subr.bf16.mxu0 0
  %399 = vmatpush1.bf16.msra.mxu0 0
  %400 = vmatprep.subr.bf16.mxu0 0
  %401 = vmatpush1.bf16.msra.mxu0 0
  %402 = vmatprep.subr.bf16.mxu0 0
  %403 = vmatpush1.bf16.msra.mxu0 0
  %404 = vmatprep.subr.bf16.mxu0 0
  %405 = vmatpush1.bf16.msra.mxu0 0
  %406 = vmatprep.subr.bf16.mxu0 0
  %407 = vmatpush1.bf16.msra.mxu0 0
  %408 = vmatprep.subr.bf16.mxu0 0
  %409 = vmatpush1.bf16.msra.mxu0 0
  %410 = vmatprep.subr.bf16.mxu0 0
  %411 = vmatpush1.bf16.msra.mxu0 0
  %412 = vmatprep.subr.bf16.mxu0 0
  %413 = vmatpush1.bf16.msra.mxu0 0
  %414 = vmatprep.mubr.bf16.mxu0 0
  %415 = vmatmul.mubr.bf16.gmra.mrb[0].mxu0 %v327
  %v416 = vpop.f32.mrb[0].mxu0
  %v417 = vadd.f32 %v324, %v416
  %v418 = vpop.f32.mrb[0].mxu0
  %v419 = vadd.f32 %v324, %v418
  %v420 = vpop.f32.mrb[0].mxu0
  %v421 = vpop.f32.mrb[0].mxu0
  %422 = vdwg.mxu0
  %v423 = vmax.f32 %v376, 0.0
  %v424 = vmax.f32 %v378, 0.0
  %v425 = vmax.f32 %v417, 0.0
  %v426 = vmax.f32 %v419, 0.0
  %427 = vst [vmem:[#allocation2] sm:$0xff] %v423
  %428 = vst [vmem:[#allocation2 + $0x8] sm:$0xff] %v424
  %429 = vst [vmem:[#allocation2 + $0x10] sm:$0xff] %v425
  %430 = vst [vmem:[#allocation2 + $0x18] sm:$0xff] %v426
  %431 = vst [vmem:[#allocation2 + $0x40] sm:$0xff] %v423
  %432 = vst [vmem:[#allocation2 + $0x48] sm:$0xff] %v424
  %433 = vst [vmem:[#allocation2 + $0x50] sm:$0xff] %v425
  %434 = vst [vmem:[#allocation2 + $0x58] sm:$0xff] %v426
  %v435 = vld [vmem:[%s7] sm:$0xf]
  %v436 = vld [vmem:[#allocation2] sm:$0xff]
  %v437 = vld [vmem:[#allocation2 + $0x8] sm:$0xff]
  %v438 = vld [vmem:[#allocation2 + $0x10] sm:$0xff]
  %v439 = vld [vmem:[#allocation2 + $0x18] sm:$0xff]
  %v440 = vld [vmem:[#allocation2 + $0x20] sm:$0xff]
  %v441 = vld [vmem:[#allocation2 + $0x28] sm:$0xff]
  %v442 = vld [vmem:[#allocation2 + $0x30] sm:$0xff]
  %v443 = vld [vmem:[#allocation2 + $0x38] sm:$0xff]
  %v444 = vld [vmem:[#allocation2 + $0x40] sm:$0xff]
  %v445 = vld [vmem:[#allocation2 + $0x48] sm:$0xff]
  %v446 = vld [vmem:[#allocation2 + $0x50] sm:$0xff]
  %v447 = vld [vmem:[#allocation2 + $0x58] sm:$0xff]
  %v448 = vpack.c.bf16 %v440, %v436
  %v449 = vpack.c.bf16 %v441, %v437
  %v450 = vpack.c.bf16 %v442, %v438
  %v451 = vpack.c.bf16 %v443, %v439
  %v452 = vpack.c.bf16 %v444, %v444
  %v453 = vpack.c.bf16 %v445, %v445
  %v454 = vpack.c.bf16 %v446, %v446
  %v455 = vpack.c.bf16 %v447, %v447
  %v456 = vld [vmem:[%s8] sm:$0xff]
  %458 = vset.pattern.permute.xlu0 0
  %459 = vperm.xlu0 %458, %v456
  %v460 = vpop.permute.xlu0 %459
  %vm462 = vcmask 195584
  %v464 = vsel %vm462, %v435, 0
  %v467 = vsel %vm91, %v452, 0
  %v470 = vsel %vm91, %v453, 0
  %v473 = vsel %vm91, %v454, 0
  %v476 = vsel %vm91, %v455, 0
  %478 = vmatprep.subr.bf16.mxu0 %v449
  %479 = vmatpush1.bf16.msra.mxu0 %v448
  %480 = vmatprep.subr.bf16.mxu0 %v470
  %481 = vmatpush1.bf16.msra.mxu0 %v467
  %482 = vmatprep.subr.bf16.mxu0 0
  %483 = vmatpush1.bf16.msra.mxu0 0
  %484 = vmatprep.subr.bf16.mxu0 0
  %485 = vmatpush1.bf16.msra.mxu0 0
  %486 = vmatprep.subr.bf16.mxu0 0
  %487 = vmatpush1.bf16.msra.mxu0 0
  %488 = vmatprep.subr.bf16.mxu0 0
  %489 = vmatpush1.bf16.msra.mxu0 0
  %490 = vmatprep.subr.bf16.mxu0 0
  %491 = vmatpush1.bf16.msra.mxu0 0
  %492 = vmatprep.subr.bf16.mxu0 0
  %493 = vmatpush1.bf16.msra.mxu0 0
  %494 = vmatprep.subr.bf16.mxu0 0
  %495 = vmatpush1.bf16.msra.mxu0 0
  %496 = vmatprep.subr.bf16.mxu0 0
  %497 = vmatpush1.bf16.msra.mxu0 0
  %498 = vmatprep.subr.bf16.mxu0 0
  %499 = vmatpush1.bf16.msra.mxu0 0
  %500 = vmatprep.subr.bf16.mxu0 0
  %501 = vmatpush1.bf16.msra.mxu0 0
  %502 = vmatprep.subr.bf16.mxu0 0
  %503 = vmatpush1.bf16.msra.mxu0 0
  %504 = vmatprep.subr.bf16.mxu0 0
  %505 = vmatpush1.bf16.msra.mxu0 0
  %506 = vmatprep.subr.bf16.mxu0 0
  %507 = vmatpush1.bf16.msra.mxu0 0
  %508 = vmatprep.subr.bf16.mxu0 0
  %509 = vmatpush1.bf16.msra.mxu0 0
  %510 = vmatprep.mubr.bf16.mxu0 0
  %511 = vmatmul.mubr.bf16.gmra.mrb[0].mxu0 %v464
  %v512 = vpop.f32.mrb[0].mxu0
  %v513 = vadd.f32 %v460, %v512
  %v514 = vpop.f32.mrb[0].mxu0
  %v515 = vadd.f32 %v460, %v514
  %v516 = vpop.f32.mrb[0].mxu0
  %v517 = vpop.f32.mrb[0].mxu0
  %518 = vdwg.mxu0
  %519 = vmatprep.subr.bf16.mxu0 %v451
  %520 = vmatpush1.bf16.msra.mxu0 %v450
  %521 = vmatprep.subr.bf16.mxu0 %v476
  %522 = vmatpush1.bf16.msra.mxu0 %v473
  %523 = vmatprep.subr.bf16.mxu0 0
  %524 = vmatpush1.bf16.msra.mxu0 0
  %525 = vmatprep.subr.bf16.mxu0 0
  %526 = vmatpush1.bf16.msra.mxu0 0
  %527 = vmatprep.subr.bf16.mxu0 0
  %528 = vmatpush1.bf16.msra.mxu0 0
  %529 = vmatprep.subr.bf16.mxu0 0
  %530 = vmatpush1.bf16.msra.mxu0 0
  %531 = vmatprep.subr.bf16.mxu0 0
  %532 = vmatpush1.bf16.msra.mxu0 0
  %533 = vmatprep.subr.bf16.mxu0 0
  %534 = vmatpush1.bf16.msra.mxu0 0
  %535 = vmatprep.subr.bf16.mxu0 0
  %536 = vmatpush1.bf16.msra.mxu0 0
  %537 = vmatprep.subr.bf16.mxu0 0
  %538 = vmatpush1.bf16.msra.mxu0 0
  %539 = vmatprep.subr.bf16.mxu0 0
  %540 = vmatpush1.bf16.msra.mxu0 0
  %541 = vmatprep.subr.bf16.mxu0 0
  %542 = vmatpush1.bf16.msra.mxu0 0
  %543 = vmatprep.subr.bf16.mxu0 0
  %544 = vmatpush1.bf16.msra.mxu0 0
  %545 = vmatprep.subr.bf16.mxu0 0
  %546 = vmatpush1.bf16.msra.mxu0 0
  %547 = vmatprep.subr.bf16.mxu0 0
  %548 = vmatpush1.bf16.msra.mxu0 0
  %549 = vmatprep.subr.bf16.mxu0 0
  %550 = vmatpush1.bf16.msra.mxu0 0
  %551 = vmatprep.mubr.bf16.mxu0 0
  %552 = vmatmul.mubr.bf16.gmra.mrb[0].mxu0 %v464
  %v553 = vpop.f32.mrb[0].mxu0
  %v554 = vadd.f32 %v460, %v553
  %v555 = vpop.f32.mrb[0].mxu0
  %v556 = vadd.f32 %v460, %v555
  %v557 = vpop.f32.mrb[0].mxu0
  %v558 = vpop.f32.mrb[0].mxu0
  %559 = vdwg.mxu0
  %v560 = vmax.f32 %v513, 0.0
  %v561 = vmax.f32 %v515, 0.0
  %v562 = vmax.f32 %v554, 0.0
  %v563 = vmax.f32 %v556, 0.0
  %564 = vst [vmem:[#allocation2] sm:$0xff] %v560
  %565 = vst [vmem:[#allocation2 + $0x8] sm:$0xff] %v561
  %566 = vst [vmem:[#allocation2 + $0x10] sm:$0xff] %v562
  %567 = vst [vmem:[#allocation2 + $0x18] sm:$0xff] %v563
  %v568 = vld [vmem:[%s9] sm:$0xf]
  %v569 = vld [vmem:[#allocation2] sm:$0xff]
  %v570 = vld [vmem:[#allocation2 + $0x8] sm:$0xff]
  %v571 = vld [vmem:[#allocation2 + $0x10] sm:$0xff]
  %v572 = vld [vmem:[#allocation2 + $0x18] sm:$0xff]
  %v573 = vpack.c.bf16 %v569, %v569
  %v574 = vpack.c.bf16 %v570, %v570
  %v575 = vpack.c.bf16 %v571, %v571
  %v576 = vpack.c.bf16 %v572, %v572
  %v577 = vld [vmem:[%s10] sm:$0xff]
  %579 = vset.pattern.permute.xlu0 0
  %580 = vperm.xlu0 %579, %v577
  %v581 = vpop.permute.xlu0 %580
  %v584 = vsel %vm87, %v568, 0
  %v587 = vsel %vm91, %v573, 0
  %v590 = vsel %vm91, %v574, 0
  %v593 = vsel %vm91, %v575, 0
  %v596 = vsel %vm91, %v576, 0
  %598 = vmatprep.subr.bf16.mxu0 %v590
  %599 = vmatpush1.bf16.msra.mxu0 %v587
  %600 = vmatprep.subr.bf16.mxu0 0
  %601 = vmatpush1.bf16.msra.mxu0 0
  %602 = vmatprep.subr.bf16.mxu0 0
  %603 = vmatpush1.bf16.msra.mxu0 0
  %604 = vmatprep.subr.bf16.mxu0 0
  %605 = vmatpush1.bf16.msra.mxu0 0
  %606 = vmatprep.subr.bf16.mxu0 0
  %607 = vmatpush1.bf16.msra.mxu0 0
  %608 = vmatprep.subr.bf16.mxu0 0
  %609 = vmatpush1.bf16.msra.mxu0 0
  %610 = vmatprep.subr.bf16.mxu0 0
  %611 = vmatpush1.bf16.msra.mxu0 0
  %612 = vmatprep.subr.bf16.mxu0 0
  %613 = vmatpush1.bf16.msra.mxu0 0
  %614 = vmatprep.subr.bf16.mxu0 0
  %615 = vmatpush1.bf16.msra.mxu0 0
  %616 = vmatprep.subr.bf16.mxu0 0
  %617 = vmatpush1.bf16.msra.mxu0 0
  %618 = vmatprep.subr.bf16.mxu0 0
  %619 = vmatpush1.bf16.msra.mxu0 0
  %620 = vmatprep.subr.bf16.mxu0 0
  %621 = vmatpush1.bf16.msra.mxu0 0
  %622 = vmatprep.subr.bf16.mxu0 0
  %623 = vmatpush1.bf16.msra.mxu0 0
  %624 = vmatprep.subr.bf16.mxu0 0
  %625 = vmatpush1.bf16.msra.mxu0 0
  %626 = vmatprep.subr.bf16.mxu0 0
  %627 = vmatpush1.bf16.msra.mxu0 0
  %628 = vmatprep.subr.bf16.mxu0 0
  %629 = vmatpush1.bf16.msra.mxu0 0
  %630 = vmatprep.mubr.bf16.mxu0 0
  %631 = vmatmul.mubr.bf16.gmra.mrb[0].mxu0 %v584
  %v632 = vpop.f32.mrb[0].mxu0
  %v633 = vadd.f32 %v581, %v632
  %v634 = vpop.f32.mrb[0].mxu0
  %v635 = vadd.f32 %v581, %v634
  %v636 = vpop.f32.mrb[0].mxu0
  %v637 = vpop.f32.mrb[0].mxu0
  %638 = vdwg.mxu0
  %639 = vmatprep.subr.bf16.mxu0 %v596
  %640 = vmatpush1.bf16.msra.mxu0 %v593
  %641 = vmatprep.subr.bf16.mxu0 0
  %642 = vmatpush1.bf16.msra.mxu0 0
  %643 = vmatprep.subr.bf16.mxu0 0
  %644 = vmatpush1.bf16.msra.mxu0 0
  %645 = vmatprep.subr.bf16.mxu0 0
  %646 = vmatpush1.bf16.msra.mxu0 0
  %647 = vmatprep.subr.bf16.mxu0 0
  %648 = vmatpush1.bf16.msra.mxu0 0
  %649 = vmatprep.subr.bf16.mxu0 0
  %650 = vmatpush1.bf16.msra.mxu0 0
  %651 = vmatprep.subr.bf16.mxu0 0
  %652 = vmatpush1.bf16.msra.mxu0 0
  %653 = vmatprep.subr.bf16.mxu0 0
  %654 = vmatpush1.bf16.msra.mxu0 0
  %655 = vmatprep.subr.bf16.mxu0 0
  %656 = vmatpush1.bf16.msra.mxu0 0
  %657 = vmatprep.subr.bf16.mxu0 0
  %658 = vmatpush1.bf16.msra.mxu0 0
  %659 = vmatprep.subr.bf16.mxu0 0
  %660 = vmatpush1.bf16.msra.mxu0 0
  %661 = vmatprep.subr.bf16.mxu0 0
  %662 = vmatpush1.bf16.msra.mxu0 0
  %663 = vmatprep.subr.bf16.mxu0 0
  %664 = vmatpush1.bf16.msra.mxu0 0
  %665 = vmatprep.subr.bf16.mxu0 0
  %666 = vmatpush1.bf16.msra.mxu0 0
  %667 = vmatprep.subr.bf16.mxu0 0
  %668 = vmatpush1.bf16.msra.mxu0 0
  %669 = vmatprep.subr.bf16.mxu0 0
  %670 = vmatpush1.bf16.msra.mxu0 0
  %671 = vmatprep.mubr.bf16.mxu0 0
  %672 = vmatmul.mubr.bf16.gmra.mrb[0].mxu0 %v584
  %v673 = vpop.f32.mrb[0].mxu0
  %v674 = vadd.f32 %v581, %v673
  %v675 = vpop.f32.mrb[0].mxu0
  %v676 = vadd.f32 %v581, %v675
  %v677 = vpop.f32.mrb[0].mxu0
  %v678 = vpop.f32.mrb[0].mxu0
  %679 = vdwg.mxu0
  %v680 = vmax.f32 %v633, 0.0
  %v681 = vmax.f32 %v635, 0.0
  %v682 = vmax.f32 %v674, 0.0
  %v683 = vmax.f32 %v676, 0.0
  %684 = vst [vmem:[#allocation2] sm:$0xff] %v680
  %685 = vst [vmem:[#allocation2 + $0x8] sm:$0xff] %v681
  %686 = vst [vmem:[#allocation2 + $0x10] sm:$0xff] %v682
  %687 = vst [vmem:[#allocation2 + $0x18] sm:$0xff] %v683
  %688 = vst [vmem:[#allocation2 + $0x60] sm:$0xff] %v680
  %689 = vst [vmem:[#allocation2 + $0x68] sm:$0xff] %v681
  %690 = vst [vmem:[#allocation2 + $0x70] sm:$0xff] %v682
  %691 = vst [vmem:[#allocation2 + $0x78] sm:$0xff] %v683
  %v692 = vld [vmem:[%s11] sm:$0xf]
  %v693 = vld [vmem:[#allocation2] sm:$0xff]
  %v694 = vld [vmem:[#allocation2 + $0x8] sm:$0xff]
  %v695 = vld [vmem:[#allocation2 + $0x10] sm:$0xff]
  %v696 = vld [vmem:[#allocation2 + $0x18] sm:$0xff]
  %v697 = vld [vmem:[#allocation2 + $0x20] sm:$0xff]
  %v698 = vld [vmem:[#allocation2 + $0x28] sm:$0xff]
  %v699 = vld [vmem:[#allocation2 + $0x30] sm:$0xff]
  %v700 = vld [vmem:[#allocation2 + $0x38] sm:$0xff]
  %v701 = vld [vmem:[#allocation2 + $0x40] sm:$0xff]
  %v702 = vld [vmem:[#allocation2 + $0x48] sm:$0xff]
  %v703 = vld [vmem:[#allocation2 + $0x50] sm:$0xff]
  %v704 = vld [vmem:[#allocation2 + $0x58] sm:$0xff]
  %v705 = vld [vmem:[#allocation2 + $0x60] sm:$0xff]
  %v706 = vld [vmem:[#allocation2 + $0x68] sm:$0xff]
  %v707 = vld [vmem:[#allocation2 + $0x70] sm:$0xff]
  %v708 = vld [vmem:[#allocation2 + $0x78] sm:$0xff]
  %v709 = vpack.c.bf16 %v697, %v693
  %v710 = vpack.c.bf16 %v698, %v694
  %v711 = vpack.c.bf16 %v699, %v695
  %v712 = vpack.c.bf16 %v700, %v696
  %v713 = vpack.c.bf16 %v705, %v701
  %v714 = vpack.c.bf16 %v706, %v702
  %v715 = vpack.c.bf16 %v707, %v703
  %v716 = vpack.c.bf16 %v708, %v704
  %v717 = vld [vmem:[%s12] sm:$0xff]
  %719 = vset.pattern.permute.xlu0 0
  %720 = vperm.xlu0 %719, %v717
  %v721 = vpop.permute.xlu0 %720
  %vm723 = vcmask 261120
  %v725 = vsel %vm723, %v692, 0
  %727 = vmatprep.subr.bf16.mxu0 %v710
  %728 = vmatpush1.bf16.msra.mxu0 %v709
  %729 = vmatprep.subr.bf16.mxu0 %v714
  %730 = vmatpush1.bf16.msra.mxu0 %v713
  %731 = vmatprep.subr.bf16.mxu0 0
  %732 = vmatpush1.bf16.msra.mxu0 0
  %733 = vmatprep.subr.bf16.mxu0 0
  %734 = vmatpush1.bf16.msra.mxu0 0
  %735 = vmatprep.subr.bf16.mxu0 0
  %736 = vmatpush1.bf16.msra.mxu0 0
  %737 = vmatprep.subr.bf16.mxu0 0
  %738 = vmatpush1.bf16.msra.mxu0 0
  %739 = vmatprep.subr.bf16.mxu0 0
  %740 = vmatpush1.bf16.msra.mxu0 0
  %741 = vmatprep.subr.bf16.mxu0 0
  %742 = vmatpush1.bf16.msra.mxu0 0
  %743 = vmatprep.subr.bf16.mxu0 0
  %744 = vmatpush1.bf16.msra.mxu0 0
  %745 = vmatprep.subr.bf16.mxu0 0
  %746 = vmatpush1.bf16.msra.mxu0 0
  %747 = vmatprep.subr.bf16.mxu0 0
  %748 = vmatpush1.bf16.msra.mxu0 0
  %749 = vmatprep.subr.bf16.mxu0 0
  %750 = vmatpush1.bf16.msra.mxu0 0
  %751 = vmatprep.subr.bf16.mxu0 0
  %752 = vmatpush1.bf16.msra.mxu0 0
  %753 = vmatprep.subr.bf16.mxu0 0
  %754 = vmatpush1.bf16.msra.mxu0 0
  %755 = vmatprep.subr.bf16.mxu0 0
  %756 = vmatpush1.bf16.msra.mxu0 0
  %757 = vmatprep.subr.bf16.mxu0 0
  %758 = vmatpush1.bf16.msra.mxu0 0
  %759 = vmatprep.mubr.bf16.mxu0 0
  %760 = vmatmul.mubr.bf16.gmra.mrb[0].mxu0 %v725
  %v761 = vpop.f32.mrb[0].mxu0
  %v762 = vadd.f32 %v721, %v761
  %v763 = vpop.f32.mrb[0].mxu0
  %v764 = vadd.f32 %v721, %v763
  %v765 = vpop.f32.mrb[0].mxu0
  %v766 = vpop.f32.mrb[0].mxu0
  %767 = vdwg.mxu0
  %768 = vmatprep.subr.bf16.mxu0 %v712
  %769 = vmatpush1.bf16.msra.mxu0 %v711
  %770 = vmatprep.subr.bf16.mxu0 %v716
  %771 = vmatpush1.bf16.msra.mxu0 %v715
  %772 = vmatprep.subr.bf16.mxu0 0
  %773 = vmatpush1.bf16.msra.mxu0 0
  %774 = vmatprep.subr.bf16.mxu0 0
  %775 = vmatpush1.bf16.msra.mxu0 0
  %776 = vmatprep.subr.bf16.mxu0 0
  %777 = vmatpush1.bf16.msra.mxu0 0
  %778 = vmatprep.subr.bf16.mxu0 0
  %779 = vmatpush1.bf16.msra.mxu0 0
  %780 = vmatprep.subr.bf16.mxu0 0
  %781 = vmatpush1.bf16.msra.mxu0 0
  %782 = vmatprep.subr.bf16.mxu0 0
  %783 = vmatpush1.bf16.msra.mxu0 0
  %784 = vmatprep.subr.bf16.mxu0 0
  %785 = vmatpush1.bf16.msra.mxu0 0
  %786 = vmatprep.subr.bf16.mxu0 0
  %787 = vmatpush1.bf16.msra.mxu0 0
  %788 = vmatprep.subr.bf16.mxu0 0
  %789 = vmatpush1.bf16.msra.mxu0 0
  %790 = vmatprep.subr.bf16.mxu0 0
  %791 = vmatpush1.bf16.msra.mxu0 0
  %792 = vmatprep.subr.bf16.mxu0 0
  %793 = vmatpush1.bf16.msra.mxu0 0
  %794 = vmatprep.subr.bf16.mxu0 0
  %795 = vmatpush1.bf16.msra.mxu0 0
  %796 = vmatprep.subr.bf16.mxu0 0
  %797 = vmatpush1.bf16.msra.mxu0 0
  %798 = vmatprep.subr.bf16.mxu0 0
  %799 = vmatpush1.bf16.msra.mxu0 0
  %800 = vmatprep.mubr.bf16.mxu0 0
  %801 = vmatmul.mubr.bf16.gmra.mrb[0].mxu0 %v725
  %v802 = vpop.f32.mrb[0].mxu0
  %v803 = vadd.f32 %v721, %v802
  %v804 = vpop.f32.mrb[0].mxu0
  %v805 = vadd.f32 %v721, %v804
  %v806 = vpop.f32.mrb[0].mxu0
  %v807 = vpop.f32.mrb[0].mxu0
  %808 = vdwg.mxu0
  %v809 = vmax.f32 %v762, 0.0
  %v810 = vmax.f32 %v764, 0.0
  %v811 = vmax.f32 %v803, 0.0
  %v812 = vmax.f32 %v805, 0.0
  %813 = vst [vmem:[#allocation2] sm:$0xff] %v809
  %814 = vst [vmem:[#allocation2 + $0x8] sm:$0xff] %v810
  %815 = vst [vmem:[#allocation2 + $0x10] sm:$0xff] %v811
  %816 = vst [vmem:[#allocation2 + $0x18] sm:$0xff] %v812
  %v817 = vld [vmem:[%s13] sm:$0xf]
  %v818 = vld [vmem:[#allocation2] sm:$0xff]
  %v819 = vld [vmem:[#allocation2 + $0x8] sm:$0xff]
  %v820 = vld [vmem:[#allocation2 + $0x10] sm:$0xff]
  %v821 = vld [vmem:[#allocation2 + $0x18] sm:$0xff]
  %v822 = vpack.c.bf16 %v818, %v818
  %v823 = vpack.c.bf16 %v819, %v819
  %v824 = vpack.c.bf16 %v820, %v820
  %v825 = vpack.c.bf16 %v821, %v821
  %v826 = vld [vmem:[%s14] sm:$0xff]
  %828 = vset.pattern.permute.xlu0 0
  %829 = vperm.xlu0 %828, %v826
  %v830 = vpop.permute.xlu0 %829
  %v833 = vsel %vm87, %v817, 0
  %v836 = vsel %vm91, %v822, 0
  %v839 = vsel %vm91, %v823, 0
  %v842 = vsel %vm91, %v824, 0
  %v845 = vsel %vm91, %v825, 0
  %847 = vmatprep.subr.bf16.mxu0 %v839
  %848 = vmatpush1.bf16.msra.mxu0 %v836
  %849 = vmatprep.subr.bf16.mxu0 0
  %850 = vmatpush1.bf16.msra.mxu0 0
  %851 = vmatprep.subr.bf16.mxu0 0
  %852 = vmatpush1.bf16.msra.mxu0 0
  %853 = vmatprep.subr.bf16.mxu0 0
  %854 = vmatpush1.bf16.msra.mxu0 0
  %855 = vmatprep.subr.bf16.mxu0 0
  %856 = vmatpush1.bf16.msra.mxu0 0
  %857 = vmatprep.subr.bf16.mxu0 0
  %858 = vmatpush1.bf16.msra.mxu0 0
  %859 = vmatprep.subr.bf16.mxu0 0
  %860 = vmatpush1.bf16.msra.mxu0 0
  %861 = vmatprep.subr.bf16.mxu0 0
  %862 = vmatpush1.bf16.msra.mxu0 0
  %863 = vmatprep.subr.bf16.mxu0 0
  %864 = vmatpush1.bf16.msra.mxu0 0
  %865 = vmatprep.subr.bf16.mxu0 0
  %866 = vmatpush1.bf16.msra.mxu0 0
  %867 = vmatprep.subr.bf16.mxu0 0
  %868 = vmatpush1.bf16.msra.mxu0 0
  %869 = vmatprep.subr.bf16.mxu0 0
  %870 = vmatpush1.bf16.msra.mxu0 0
  %871 = vmatprep.subr.bf16.mxu0 0
  %872 = vmatpush1.bf16.msra.mxu0 0
  %873 = vmatprep.subr.bf16.mxu0 0
  %874 = vmatpush1.bf16.msra.mxu0 0
  %875 = vmatprep.subr.bf16.mxu0 0
  %876 = vmatpush1.bf16.msra.mxu0 0
  %877 = vmatprep.subr.bf16.mxu0 0
  %878 = vmatpush1.bf16.msra.mxu0 0
  %879 = vmatprep.mubr.bf16.mxu0 0
  %880 = vmatmul.mubr.bf16.gmra.mrb[0].mxu0 %v833
  %v881 = vpop.f32.mrb[0].mxu0
  %v882 = vadd.f32 %v830, %v881
  %v883 = vpop.f32.mrb[0].mxu0
  %v884 = vadd.f32 %v830, %v883
  %v885 = vpop.f32.mrb[0].mxu0
  %v886 = vpop.f32.mrb[0].mxu0
  %887 = vdwg.mxu0
  %888 = vmatprep.subr.bf16.mxu0 %v845
  %889 = vmatpush1.bf16.msra.mxu0 %v842
  %890 = vmatprep.subr.bf16.mxu0 0
  %891 = vmatpush1.bf16.msra.mxu0 0
  %892 = vmatprep.subr.bf16.mxu0 0
  %893 = vmatpush1.bf16.msra.mxu0 0
  %894 = vmatprep.subr.bf16.mxu0 0
  %895 = vmatpush1.bf16.msra.mxu0 0
  %896 = vmatprep.subr.bf16.mxu0 0
  %897 = vmatpush1.bf16.msra.mxu0 0
  %898 = vmatprep.subr.bf16.mxu0 0
  %899 = vmatpush1.bf16.msra.mxu0 0
  %900 = vmatprep.subr.bf16.mxu0 0
  %901 = vmatpush1.bf16.msra.mxu0 0
  %902 = vmatprep.subr.bf16.mxu0 0
  %903 = vmatpush1.bf16.msra.mxu0 0
  %904 = vmatprep.subr.bf16.mxu0 0
  %905 = vmatpush1.bf16.msra.mxu0 0
  %906 = vmatprep.subr.bf16.mxu0 0
  %907 = vmatpush1.bf16.msra.mxu0 0
  %908 = vmatprep.subr.bf16.mxu0 0
  %909 = vmatpush1.bf16.msra.mxu0 0
  %910 = vmatprep.subr.bf16.mxu0 0
  %911 = vmatpush1.bf16.msra.mxu0 0
  %912 = vmatprep.subr.bf16.mxu0 0
  %913 = vmatpush1.bf16.msra.mxu0 0
  %914 = vmatprep.subr.bf16.mxu0 0
  %915 = vmatpush1.bf16.msra.mxu0 0
  %916 = vmatprep.subr.bf16.mxu0 0
  %917 = vmatpush1.bf16.msra.mxu0 0
  %918 = vmatprep.subr.bf16.mxu0 0
  %919 = vmatpush1.bf16.msra.mxu0 0
  %920 = vmatprep.mubr.bf16.mxu0 0
  %921 = vmatmul.mubr.bf16.gmra.mrb[0].mxu0 %v833
  %v922 = vpop.f32.mrb[0].mxu0
  %v923 = vadd.f32 %v830, %v922
  %v924 = vpop.f32.mrb[0].mxu0
  %v925 = vadd.f32 %v830, %v924
  %v926 = vpop.f32.mrb[0].mxu0
  %v927 = vpop.f32.mrb[0].mxu0
  %928 = vdwg.mxu0
  %929 = vst [vmem:[%s15] sm:$0xff] %v882
  %930 = vst [vmem:[%s15 + $0x8] sm:$0xff] %v884
  %s931 = scalar_lea.vmem %s15, 16
  %932 = vst [vmem:[%s931] sm:$0xff] %v923
  %933 = vst [vmem:[%s931 + $0x8] sm:$0xff] %v925
  // Predicated region
  $region62: #{evonet_forward.1} parent=0 // pred_check
    _
  $region63: #{evonet_forward.1} parent=0 // pred_check_branch
    %935 = sbr.rel (0) target = $region65
  $region64: #{evonet_forward.1} parent=0 // pred_region
    _
  $region65: #{evonet_forward.1} parent=0 // pred_fallthru
    _
  // Predicated region
  $region66: #{evonet_forward.1} parent=0 // pred_check
    _
  $region67: #{evonet_forward.1} parent=0 // pred_check_branch
    %937 = sbr.rel (0) target = $region69
  $region68: #{evonet_forward.1} parent=0 // pred_region
    _
  $region69: #{evonet_forward.1} parent=0 // pred_fallthru
    _

</llo_original>
